<compile_context>
chip_gen: v5e
topology: v5e:2x2
jax: 0.10.0
libtpu: 0.0.40
codegen_flags: <defaults>
</compile_context>

<pallas_src>
import math

import jax
import jax.numpy as jnp
from jax.experimental import pallas as pl
from jax.experimental.pallas import tpu as pltpu

# Standard L0 / hard-concrete constants (CoFiPruning module-level globals).
LIMIT_A = -0.1
LIMIT_B = 1.1
EPSILON = 1e-6
TEMPERATURE = 2.0 / 3.0

# Folded constants:  sigmoid(x)*(LB-LA) + LA == HALF_SCALE*tanh(x/2) + MID
_TANH_COEF = 0.5 / TEMPERATURE            # 0.75  ( (1/T) * (1/2) )
_HALF_SCALE = 0.5 * (LIMIT_B - LIMIT_A)   # 0.6
_MID = _HALF_SCALE + LIMIT_A              # 0.5


# ----------------------------- Pallas kernel --------------------------------
def _hard_concrete_kernel(loga_ref, eps_ref, z_ref):
    """z = hardtanh( sigmoid((log(eps)-log(1-eps)+loga)/T)*(LB-LA)+LA, 0, 1).

    Rewritten as one log + one tanh per element (see header notes #2).
    """
    eps = eps_ref[...]
    loga = loga_ref[...]
    # One log instead of two: logit(eps) = log(eps / (1 - eps)).
    log_ratio = jnp.log(eps / (1.0 - eps))
    z = _HALF_SCALE * jnp.tanh(_TANH_COEF * (log_ratio + loga)) + _MID
    z_ref[...] = jnp.clip(z, 0.0, 1.0)


def _pick_block_rows(n_rows, n_cols):
    """Row-tile size: ~1 MiB lane-full f32 blocks; whole array when small."""
    target_bytes = 1 << 20
    rows = max(1, min(n_rows, target_bytes // max(1, n_cols * 4)))
    if rows < n_rows:
        # Partial tiling: keep blocks sublane-aligned (multiple of 8 rows) and
        # require a lane-dense last dim; otherwise fall back to the whole array
        # (full-array blocks are exempt from the (8,128) divisibility rule).
        if n_cols % 128 != 0:
            return n_rows
        rows = min(n_rows, max(8, (rows // 8) * 8))
    return rows


def l0_cofi_sample(loga_slab, eps_slab):
    """Single-launch hard-concrete sampling over a packed (R, C) f32 slab."""
    assert loga_slab.shape == eps_slab.shape and loga_slab.ndim == 2
    n_rows, n_cols = loga_slab.shape
    block_rows = _pick_block_rows(n_rows, n_cols)
    num_blocks = pl.cdiv(n_rows, block_rows)

    n_elems = n_rows * n_cols
    cost = pl.CostEstimate(
        flops=8 * n_elems,
        transcendentals=3 * n_elems,           # log + tanh (+ recip of the div)
        bytes_accessed=3 * n_elems * 4,        # loga in, eps in, z out (f32)
    )

    return pl.pallas_call(
        _hard_concrete_kernel,
        grid=(num_blocks,),
        in_specs=[
            pl.BlockSpec((block_rows, n_cols), lambda i: (i, 0)),
            pl.BlockSpec((block_rows, n_cols), lambda i: (i, 0)),
        ],
        out_specs=pl.BlockSpec((block_rows, n_cols), lambda i: (i, 0)),
        out_shape=jax.ShapeDtypeStruct((n_rows, n_cols), jnp.float32),
        compiler_params=pltpu.CompilerParams(
            dimension_semantics=("parallel",),   # v7x: grid shared by both TCs
        ),
        cost_estimate=cost,
    )(loga_slab.astype(jnp.float32), eps_slab.astype(jnp.float32))


# ----------------------------- Module wrapper --------------------------------
class L0CoFiPallas:
    """JAX/Pallas re-implementation of L0CoFi with pruning_type='mlp+sgu+layer'.

    types = ['intermediate', 'sgu', 'layer'] (no 'hidden' for this pruning_type).
    Only the training=True forward (hard-concrete sampling) is a Pallas kernel.
    """

    def __init__(self, n_layers, d_token, d_hidden, droprate_init=0.5, key=None):
        self.n_layers = n_layers
        self.d_hidden = d_token            # attribute naming follows the torch code
        self.d_intermediate = d_hidden
        self.droprate_init = droprate_init if droprate_init != 0.0 else 0.5

        if key is None:
            key = jax.random.PRNGKey(0)
        k_int, k_sgu, k_layer = jax.random.split(key, 3)

        # reset_loga: normal_(mean, 0.01); 'intermediate' mean = log(1-p)-log(p),
        # 'sgu' and 'layer' mean = 0.5
        mean_int = math.log(1.0 - self.droprate_init) - math.log(self.droprate_init)
        self.int_loga = (
            mean_int + 0.01 * jax.random.normal(k_int, (n_layers, self.d_intermediate))
        ).astype(jnp.float32)
        self.intsgu_loga = (
            0.5 + 0.01 * jax.random.normal(k_sgu, (n_layers,))
        ).astype(jnp.float32)
        self.intlayer_loga = (
            0.5 + 0.01 * jax.random.normal(k_layer, (n_layers,))
        ).astype(jnp.float32)

        # Pack all log-alphas into ONE lane-dense slab (perf review #9):
        # rows [0:n_layers]        -> intermediate loga (n_layers, d_intermediate)
        # rows [n_layers:]         -> flattened [sgu, layer] padded to full width
        sl_flat = jnp.concatenate([self.intsgu_loga, self.intlayer_loga])  # (2*L,)
        pad = (-sl_flat.size) % self.d_intermediate
        sl_rows = jnp.pad(sl_flat, (0, pad)).reshape(-1, self.d_intermediate)
        self.n_sl = int(sl_flat.size)                     # 2 * n_layers valid scalars
        self.loga_slab = jnp.concatenate([self.int_loga, sl_rows], axis=0)
        self.slab_shape = self.loga_slab.shape            # (R, d_intermediate)

        self.types = ["intermediate", "sgu", "layer"]
        self.shapes = {
            "intermediate": (n_layers, self.d_intermediate),
            "sgu": (n_layers,),
            "layer": (n_layers,),
        }

    def forward(self, key, training=True):
        if not training:
            # TODO(synk): eval-mode _deterministic_z (topk + data-dependent
            # zeroing) is not implemented as a Pallas kernel.
            raise NotImplementedError("Only training=True forward is implemented.")

        # Uniform noise eps in [EPSILON, 1 - EPSILON), generated host-side so the
        # kernel stays portable (see header note #1).
        eps_slab = jax.random.uniform(
            key, self.slab_shape, dtype=jnp.float32,
            minval=EPSILON, maxval=1.0 - EPSILON,
        )

        # --- single fused Pallas launch over the packed slab ---
        z_slab = l0_cofi_sample(self.loga_slab, eps_slab)

        n_layers = self.n_layers
        z_int = z_slab[:n_layers]
        z_sl = z_slab[n_layers:].reshape(-1)[: self.n_sl]
        zs = {
            "intermediate_z": z_int.reshape(self.shapes["intermediate"]),
            "sgu_z": z_sl[:n_layers].reshape(self.shapes["sgu"]),
            "layer_z": z_sl[n_layers:].reshape(self.shapes["layer"]),
        }
        return zs


# ----------------------------------- main ------------------------------------
if __name__ == "__main__":
    # Small, forward-consistent shapes: n_layers=4, d_token=32, d_hidden=64.
    n_layers, d_token, d_hidden = 4, 32, 64

    module = L0CoFiPallas(n_layers, d_token, d_hidden, key=jax.random.PRNGKey(0))
    zs = module.forward(key=jax.random.PRNGKey(1234), training=True)

    zs = jax.tree_util.tree_map(jax.block_until_ready, zs)

    # Sanity: shapes and value range match torch semantics (hardtanh to [0,1]).
    assert zs["intermediate_z"].shape == (n_layers, d_hidden)
    assert zs["sgu_z"].shape == (n_layers,)
    assert zs["layer_z"].shape == (n_layers,)
    for v in zs.values():
        assert bool(jnp.all(v >= 0.0)) and bool(jnp.all(v <= 1.0))
        assert bool(jnp.all(jnp.isfinite(v)))

    # Cross-check the fused tanh rewrite against the literal torch formula.
    eps_chk = jax.random.uniform(
        jax.random.PRNGKey(1234), module.slab_shape, dtype=jnp.float32,
        minval=EPSILON, maxval=1.0 - EPSILON,
    )
    y_ref = jax.nn.sigmoid(
        (jnp.log(eps_chk) - jnp.log(1.0 - eps_chk) + module.loga_slab) / TEMPERATURE
    )
    z_ref = jnp.clip(y_ref * (LIMIT_B - LIMIT_A) + LIMIT_A, 0.0, 1.0)
    z_ker = l0_cofi_sample(module.loga_slab, eps_chk)
    assert bool(jnp.all(jnp.abs(z_ker - z_ref) < 1e-5))

    print("KERNEL_OK")
</pallas_src>

<mosaic_0001>
module attributes {stable_mosaic.version = 11 : i64} {
  func.func @_hard_concrete_kernel(%arg0: i32, %arg1: memref<5x64xf32, #tpu.memory_space<vmem>>, %arg2: memref<5x64xf32, #tpu.memory_space<vmem>>, %arg3: memref<5x64xf32, #tpu.memory_space<vmem>>) attributes {dimension_semantics = [#tpu.dimension_semantics<parallel>], iteration_bounds = array<i64: 1>, scalar_prefetch = 0 : i64, scratch_operands = 0 : i64, tpu.core_type = #tpu.core_type<tc>, window_params = [{transform_indices = @transform_0, window_bounds = array<i64: 5, 64>}, {transform_indices = @transform_1, window_bounds = array<i64: 5, 64>}, {transform_indices = @transform_2, window_bounds = array<i64: 5, 64>}]} {
    %c0 = arith.constant 0 : index
    %c0_0 = arith.constant 0 : index
    %0 = vector.load %arg2[%c0, %c0_0] : memref<5x64xf32, #tpu.memory_space<vmem>>, vector<5x64xf32>
    %c0_1 = arith.constant 0 : index
    %c0_2 = arith.constant 0 : index
    %1 = vector.load %arg1[%c0_1, %c0_2] : memref<5x64xf32, #tpu.memory_space<vmem>>, vector<5x64xf32>
    %cst = arith.constant 1.000000e+00 : f32
    %2 = vector.broadcast %cst : f32 to vector<5x64xf32>
    %3 = arith.subf %2, %0 : vector<5x64xf32>
    %4 = arith.divf %0, %3 : vector<5x64xf32>
    %5 = math.log %4 : vector<5x64xf32>
    %6 = arith.addf %5, %1 : vector<5x64xf32>
    %cst_3 = arith.constant 7.500000e-01 : f32
    %7 = vector.broadcast %cst_3 : f32 to vector<5x64xf32>
    %8 = arith.mulf %7, %6 : vector<5x64xf32>
    %9 = math.tanh %8 : vector<5x64xf32>
    %cst_4 = arith.constant 6.000000e-01 : f32
    %10 = vector.broadcast %cst_4 : f32 to vector<5x64xf32>
    %11 = arith.mulf %10, %9 : vector<5x64xf32>
    %cst_5 = arith.constant 5.000000e-01 : f32
    %12 = vector.broadcast %cst_5 : f32 to vector<5x64xf32>
    %13 = arith.addf %11, %12 : vector<5x64xf32>
    %cst_6 = arith.constant 0.000000e+00 : f32
    %cst_7 = arith.constant 1.000000e+00 : f32
    %14 = vector.broadcast %cst_6 : f32 to vector<5x64xf32>
    %15 = arith.maximumf %14, %13 : vector<5x64xf32>
    %16 = vector.broadcast %cst_7 : f32 to vector<5x64xf32>
    %17 = arith.minimumf %16, %15 : vector<5x64xf32>
    %c0_8 = arith.constant 0 : index
    %c0_9 = arith.constant 0 : index
    %18 = vector.load %arg3[%c0_8, %c0_9] : memref<5x64xf32, #tpu.memory_space<vmem>>, vector<5x64xf32>
    tpu.vector_store %arg3[%c0_8, %c0_9], %17 {strides = array<i32>} : memref<5x64xf32, #tpu.memory_space<vmem>>, vector<5x64xf32>,
    return
  }
  func.func @transform_0(%arg0: i32) -> (i32, i32) {
    %c0_i32 = arith.constant 0 : i32
    %c0_i32_0 = arith.constant 0 : i32
    return %arg0, %c0_i32 : i32, i32
  }
  func.func @transform_1(%arg0: i32) -> (i32, i32) {
    %c0_i32 = arith.constant 0 : i32
    %c0_i32_0 = arith.constant 0 : i32
    return %arg0, %c0_i32 : i32, i32
  }
  func.func @transform_2(%arg0: i32) -> (i32, i32) {
    %c0_i32 = arith.constant 0 : i32
    %c0_i32_0 = arith.constant 0 : i32
    return %arg0, %c0_i32 : i32, i32
  }
}

</mosaic_0001>

<llo_original>
// kernel: tpu_custom_call.1
$region0: #{tpu_custom_call.1}
  #allocation0 [shape = 'u32[]', space=smem, size = 0x4, offset = 0x4, fixed_abs, tag = 'smem constant byte address 0x4 - core index']
  #allocation1 [shape = 'u32[72,128]{1,0:T(1,128)}', space=vmem, size = 0x9000, scoped, tag = 'internal scratch']
  %s0 = inlined_call_operand.hbm [shape: f32[5,64], index: 0, kind: input, shape index: {}]
  %s1 = inlined_call_operand.hbm [shape: f32[5,64], index: 1, kind: input, shape index: {}]
  %s2 = inlined_call_operand.hbm [shape: f32[5,64], index: 2, kind: output, shape index: {}]
  %s3 = sld [smem:[#allocation0]]
  $region26: #{tpu_custom_call.1} parent=0
    _
  %s5 = ssub.s32 1, %s3
  %s6 = scalar_select 0, %s5, %s3
  $region1: #{tpu_custom_call.1} parent=0
    #allocation2 [shape = 'u8[4096]{0}', space=vmem, size = 0x1000, scoped, tag = 'input window, operand 0, single buffered']
    #allocation3 [shape = 's32[1]{0}', space=sflag, size = 0x4, scoped, tag = 'scoped memory for tpu_custom_call.1']
    #allocation4 [shape = 's32[1]{0}', space=sflag, size = 0x4, scoped, tag = 'scoped memory for tpu_custom_call.1']
    #allocation5 [shape = 'u8[4096]{0}', space=vmem, size = 0x1000, scoped, tag = 'input window, operand 1, single buffered']
    #allocation6 [shape = 's32[1]{0}', space=sflag, size = 0x4, scoped, tag = 'scoped memory for tpu_custom_call.1']
    #allocation7 [shape = 'u8[4096]{0}', space=vmem, size = 0x1000, scoped, tag = 'output window, operand 0, single buffered']
    %7 = vsyncpa [#allocation3], 0
    %8 = vsyncpa [#allocation6], 0
    %9 = vsyncpa [#allocation4], 0
    // Predicated region
    $region2: #{tpu_custom_call.1} parent=1 // pred_check
      _
    $region3: #{tpu_custom_call.1} parent=1 // pred_check_branch
      %11 = sbr.rel (0) target = $region5
    $region4: #{tpu_custom_call.1} parent=1 // pred_region
      %13 = vsyncadd [#allocation3], 0
      %s15 = sshll.u32 %s0, 4
      %s16 = int_to_ptr.hbm [resolvable:$true] %s15
      %s17 = sshll.u32 [#allocation2], 4
      %s18 = int_to_ptr.vmem [resolvable:$true] %s17
      %20 = dma.hbm_to_vmem [thread:$0]  %s16, 128, %s18, [#allocation3]
    $region5: #{tpu_custom_call.1} parent=1 // pred_fallthru
      _
    // Predicated region
    $region6: #{tpu_custom_call.1} parent=1 // pred_check
      _
    $region7: #{tpu_custom_call.1} parent=1 // pred_check_branch
      %22 = sbr.rel (0) target = $region9
    $region8: #{tpu_custom_call.1} parent=1 // pred_region
      %24 = vsyncadd [#allocation6], 0
      %s26 = sshll.u32 %s1, 4
      %s27 = int_to_ptr.hbm [resolvable:$true] %s26
      %s28 = sshll.u32 [#allocation5], 4
      %s29 = int_to_ptr.vmem [resolvable:$true] %s28
      %31 = dma.hbm_to_vmem [thread:$0]  %s27, 128, %s29, [#allocation6]
    $region9: #{tpu_custom_call.1} parent=1 // pred_fallthru
      _
    // Predicated region
    $region10: #{tpu_custom_call.1} parent=1 // pred_check
      _
    $region11: #{tpu_custom_call.1} parent=1 // pred_check_branch
      %33 = sbr.rel (0) target = $region13
    $region12: #{tpu_custom_call.1} parent=1 // pred_region
      %35 = dma.done [#allocation3], 128
    $region13: #{tpu_custom_call.1} parent=1 // pred_fallthru
      _
    // Predicated region
    $region14: #{tpu_custom_call.1} parent=1 // pred_check
      _
    $region15: #{tpu_custom_call.1} parent=1 // pred_check_branch
      %37 = sbr.rel (0) target = $region17
    $region16: #{tpu_custom_call.1} parent=1 // pred_region
      %39 = dma.done [#allocation6], 128
    $region17: #{tpu_custom_call.1} parent=1 // pred_fallthru
      _
    %v40 = vld [vmem:[#allocation5] sm:$0x1f]
    %v41 = vld [vmem:[#allocation2] sm:$0x1f]
    %v42 = vsub.f32 1.0, %v40
    %v43 = vrcp.pop %v42
    %v44 = vmul.f32 %v42, %v43
    %v45 = vsub.f32 1.0, %v44
    %v46 = vmul.f32 %v43, %v45
    %v47 = vadd.f32 %v43, %v46
    %vm48 = vweird.f32 %v42
    %vm49 = vweird.f32 %v43
    %vm50 = vmor %vm48, %vm49
    %v51 = vsel %vm50, %v43, %v47
    %v52 = vand.u32 2147483647, %v42
    %vm53 = vcmp.eq.f32.partialorder %v52, 8.507059e+37
    %v54 = vand.u32 %v42, 2147483648
    %v55 = vor.u32 1.1754944e-38, %v54
    %v56 = vsel %vm53, %v55, %v51
    %v57 = vmul.f32 %v40, %v56
    %v58 = vlog2.pop %v57
    %v59 = vmul.f32 %v58, 0.6931472
    %v60 = vadd.f32 %v59, %v41
    %v61 = vmul.f32 %v60, 0.75
    %v62 = vtanh.pop %v61
    %v63 = vmul.f32 %v62, 0.6
    %v64 = vadd.f32 %v63, 0.5
    %v65 = vmax.f32 %v64, 0.0
    %v66 = vmin.f32 %v65, 1.0
    %vm67 = vcmask 520192
    %68 = vst.msk [vmem:[#allocation7] sm:$0x1f] %vm67, %v66
    // Predicated region
    $region18: #{tpu_custom_call.1} parent=1 // pred_check
      _
    $region19: #{tpu_custom_call.1} parent=1 // pred_check_branch
      %70 = sbr.rel (0) target = $region21
    $region20: #{tpu_custom_call.1} parent=1 // pred_region
      %72 = vsyncadd [#allocation4], 0
      %s74 = sshll.u32 [#allocation7], 4
      %s75 = int_to_ptr.vmem [resolvable:$true] %s74
      %s76 = sshll.u32 %s2, 4
      %s77 = int_to_ptr.hbm [resolvable:$true] %s76
      %79 = dma.vmem_to_hbm [thread:$0]  %s75, 128, %s77, [#allocation4]
    $region21: #{tpu_custom_call.1} parent=1 // pred_fallthru
      _
    // Predicated region
    $region22: #{tpu_custom_call.1} parent=1 // pred_check
      _
    $region23: #{tpu_custom_call.1} parent=1 // pred_check_branch
      %81 = sbr.rel (0) target = $region25
    $region24: #{tpu_custom_call.1} parent=1 // pred_region
      %83 = dma.done [#allocation4], 128
    $region25: #{tpu_custom_call.1} parent=1 // pred_fallthru
      _
    %84 = vsyncpa [#allocation3], 1
    %85 = vsyncpa [#allocation6], 1
    %86 = vsyncpa [#allocation4], 1

</llo_original>
